<compile_context>
chip_gen: v7x
topology: tpu7x:2x2x1
jax: 0.10.0
libtpu: 0.0.40
codegen_flags: <defaults>
</compile_context>

<pallas_src>
import functools

import jax
import jax.numpy as jnp
from jax import lax
from jax.experimental import pallas as pl
from jax.experimental.pallas import tpu as pltpu

EPS = 1e-5
LANES = 128


# --------------------------- fused single-pass kernel ---------------------- #

def _fused_bn_relu_kernel(gamma_ref, beta_ref, x_ref, o_ref, *,
                          count, n_pad, eps):
    """One channel per grid step: stats + normalize + ReLU from a resident slab.

    gamma_ref/beta_ref : (C,) f32 in SMEM
    x_ref / o_ref      : (N, rows, 128)  -- the whole channel slab
    count              : number of *real* (non-pad) elements per channel
    n_pad              : number of zero-pad elements per channel
    """
    c = pl.program_id(0)
    xb = x_ref[...].astype(jnp.float32)

    inv_count = 1.0 / count
    mean = jnp.sum(xb) * inv_count          # zero pads add nothing to the sum
    d = xb - mean
    # Centered (numerically robust) variance; remove the pad contribution,
    # which is exactly n_pad * mean^2 because padded entries are 0.
    ssd = jnp.maximum(jnp.sum(d * d) - n_pad * mean * mean, 0.0)
    inv_std = lax.rsqrt(ssd * inv_count + eps)   # one rsqrt/channel (EUP slot)

    scale = gamma_ref[c] * inv_std
    y = d * scale + beta_ref[c]
    o_ref[...] = jnp.maximum(y, 0.0).astype(o_ref.dtype)


# --------------------------- two-pass fallback kernels --------------------- #

def _stats_kernel(x_ref, psum_ref, pssq_ref, *, r_tile):
    """Accumulate per-channel partial sum / sum-of-squares into (8, lanes)."""
    n = pl.program_id(1)
    t = pl.program_id(2)

    @pl.when(jnp.logical_and(n == 0, t == 0))
    def _init():
        psum_ref[...] = jnp.zeros_like(psum_ref)
        pssq_ref[...] = jnp.zeros_like(pssq_ref)

    xb = x_ref[...].astype(jnp.float32)              # (r_tile, lanes)
    if r_tile % 8 == 0:
        # Pure VPU adds: collapse groups of 8 rows, keep the 8-sublane shape
        # resident, defer the cross-sublane reduce to the tiny host epilogue.
        xr = xb.reshape(r_tile // 8, 8, xb.shape[-1])
        psum_ref[...] += jnp.sum(xr, axis=0)
        pssq_ref[...] += jnp.sum(xr * xr, axis=0)
    else:
        psum_ref[0:1, :] += jnp.sum(xb, axis=0, keepdims=True)
        pssq_ref[0:1, :] += jnp.sum(xb * xb, axis=0, keepdims=True)


def _norm_kernel(scale_ref, shift_ref, x_ref, o_ref):
    """y = max(x * scale[c] + shift[c], 0)."""
    c = pl.program_id(0)
    s = scale_ref[c]
    b = shift_ref[c]
    y = x_ref[...].astype(jnp.float32) * s + b
    o_ref[...] = jnp.maximum(y, 0.0).astype(o_ref.dtype)


# ------------------------------- helpers ----------------------------------- #

def _pad_and_view(x_nchw, hw_pad, rows):
    """Free reshape NCHW -> (N, C, rows, 128); zero-pads HW if needed."""
    N, C, H, W = x_nchw.shape
    hw = H * W
    xf = x_nchw.reshape(N, C, hw)
    if hw_pad != hw:
        xf = jnp.pad(xf, ((0, 0), (0, 0), (0, hw_pad - hw)))
    return xf.reshape(N, C, rows, LANES)


def _fallback_tiling(hw, cap_rows=2048):
    """Lane-dense tiling for the two-pass path: 128 lanes, <=1 MiB row tiles."""
    rows = -(-hw // LANES)
    if rows <= cap_rows:
        r_tile = rows
    else:
        r_tile = 0
        for cand in range(cap_rows, 7, -8):          # multiples of 8, descending
            if rows % cand == 0:
                r_tile = cand
                break
        if r_tile == 0:                              # no small divisor: pad rows
            rows = -(-rows // cap_rows) * cap_rows
            r_tile = cap_rows
    return rows, r_tile, rows * LANES


# ------------------------------- wrapper ----------------------------------- #

def batchnorm2d_relu(x_nchw, gamma, beta, eps=EPS,
                     fused_slab_budget=4 * 1024 * 1024):
    """x_nchw: (N, C, H, W); gamma/beta: (C,). Returns ReLU(BatchNorm2d(x))."""
    N, C, H, W = x_nchw.shape
    HW = H * W
    count = N * HW
    gamma32 = gamma.astype(jnp.float32)
    beta32 = beta.astype(jnp.float32)
    vmem_lim = 32 * 1024 * 1024                      # safe on v5e / v6e / v7x

    rows128 = -(-HW // LANES)
    hw_pad128 = rows128 * LANES
    slab_bytes = N * rows128 * LANES * 4

    if slab_bytes <= fused_slab_budget:
        # -------- fused single pass: read x once, write y once (2x traffic) --
        x4 = _pad_and_view(x_nchw, hw_pad128, rows128)
        kern = functools.partial(
            _fused_bn_relu_kernel,
            count=float(count), n_pad=float(N * (hw_pad128 - HW)), eps=eps)
        y4 = pl.pallas_call(
            kern,
            grid=(C,),
            in_specs=[
                pl.BlockSpec(memory_space=pltpu.MemorySpace.SMEM),   # gamma (C,)
                pl.BlockSpec(memory_space=pltpu.MemorySpace.SMEM),   # beta  (C,)
                pl.BlockSpec((N, None, rows128, LANES),
                             lambda c: (0, c, 0, 0)),
            ],
            out_specs=pl.BlockSpec((N, None, rows128, LANES),
                                   lambda c: (0, c, 0, 0)),
            out_shape=jax.ShapeDtypeStruct((N, C, rows128, LANES), x_nchw.dtype),
            compiler_params=pltpu.CompilerParams(
                dimension_semantics=("parallel",),    # v7x: shard C over cores
                vmem_limit_bytes=vmem_lim),
            cost_estimate=pl.CostEstimate(
                flops=5 * N * C * HW, transcendentals=C,
                bytes_accessed=2 * N * C * hw_pad128 * 4),
        )(gamma32, beta32, x4)
        y = y4.reshape(N, C, hw_pad128)
        if hw_pad128 != HW:
            y = y[:, :, :HW]
        return y.reshape(N, C, H, W)

    # -------------- fallback: two-pass (stats sweep, then normalize) ---------
    rows, r_tile, hw_pad = _fallback_tiling(HW)
    T = rows // r_tile
    x4 = _pad_and_view(x_nchw, hw_pad, rows)
    x_spec = pl.BlockSpec((None, None, r_tile, LANES),
                          lambda c, n, t: (n, c, t, 0))

    psum, pssq = pl.pallas_call(
        functools.partial(_stats_kernel, r_tile=r_tile),
        grid=(C, N, T),
        in_specs=[x_spec],
        out_specs=(
            pl.BlockSpec((None, 8, LANES), lambda c, n, t: (c, 0, 0)),
            pl.BlockSpec((None, 8, LANES), lambda c, n, t: (c, 0, 0)),
        ),
        out_shape=(
            jax.ShapeDtypeStruct((C, 8, LANES), jnp.float32),
            jax.ShapeDtypeStruct((C, 8, LANES), jnp.float32),
        ),
        compiler_params=pltpu.CompilerParams(
            dimension_semantics=("parallel", "arbitrary", "arbitrary"),
            vmem_limit_bytes=vmem_lim),
        cost_estimate=pl.CostEstimate(
            flops=3 * N * C * HW, transcendentals=0,
            bytes_accessed=N * C * hw_pad * 4),
    )(x4)

    # Tiny (C,) epilogue: fold BN into per-channel scale/shift.
    # Zero pads contribute 0 to both sums; divide by the true element count.
    sums = jnp.sum(psum, axis=(1, 2))
    ssqs = jnp.sum(pssq, axis=(1, 2))
    mean = sums / count
    var = jnp.maximum(ssqs / count - mean * mean, 0.0)   # biased variance
    inv = lax.rsqrt(var + eps)
    scale = gamma32 * inv
    shift = beta32 - mean * scale

    y4 = pl.pallas_call(
        _norm_kernel,
        grid=(C, N, T),
        in_specs=[
            pl.BlockSpec(memory_space=pltpu.MemorySpace.SMEM),       # scale (C,)
            pl.BlockSpec(memory_space=pltpu.MemorySpace.SMEM),       # shift (C,)
            x_spec,
        ],
        out_specs=pl.BlockSpec((None, None, r_tile, LANES),
                               lambda c, n, t: (n, c, t, 0)),
        out_shape=jax.ShapeDtypeStruct((N, C, rows, LANES), x_nchw.dtype),
        compiler_params=pltpu.CompilerParams(
            dimension_semantics=("parallel", "parallel", "parallel"),
            vmem_limit_bytes=vmem_lim),
        cost_estimate=pl.CostEstimate(
            flops=3 * N * C * HW, transcendentals=0,
            bytes_accessed=2 * N * C * hw_pad * 4),
    )(scale, shift, x4)

    y = y4.reshape(N, C, hw_pad)
    if hw_pad != HW:
        y = y[:, :, :HW]
    return y.reshape(N, C, H, W)


# ------------------------------ reference ----------------------------------- #

def _reference(x_nchw, gamma, beta, eps=EPS):
    mean = jnp.mean(x_nchw, axis=(0, 2, 3), keepdims=True)
    var = jnp.mean((x_nchw - mean) ** 2, axis=(0, 2, 3), keepdims=True)
    y = (x_nchw - mean) * lax.rsqrt(var + eps)
    y = y * gamma.reshape(1, -1, 1, 1) + beta.reshape(1, -1, 1, 1)
    return jnp.maximum(y, 0.0)


if __name__ == "__main__":
    key = jax.random.PRNGKey(0)
    N, C, H, W = 2, 3, 16, 16                  # BatchNorm2d(3) -> C = 3
    x = jax.random.normal(key, (N, C, H, W), dtype=jnp.float32)

    # BatchNorm2d default affine init: weight = 1, bias = 0
    gamma = jnp.ones((C,), dtype=jnp.float32)
    beta = jnp.zeros((C,), dtype=jnp.float32)

    # TODO(synk): running-mean/var buffer updates (training-side state of
    # nn.BatchNorm2d) are out of scope for this stateless forward pass.
    ref = _reference(x, gamma, beta)

    # Primary (fused single-pass) path.
    out = jax.jit(batchnorm2d_relu)(x, gamma, beta)
    jax.block_until_ready(out)
    assert out.shape == (N, C, H, W)
    assert jnp.allclose(out, ref, atol=1e-4, rtol=1e-4), float(
        jnp.max(jnp.abs(out - ref)))

    # Also exercise the two-pass fallback (used when a channel slab would not
    # fit the fused-path VMEM budget).
    out2 = jax.jit(
        functools.partial(batchnorm2d_relu, fused_slab_budget=0))(x, gamma, beta)
    jax.block_until_ready(out2)
    assert jnp.allclose(out2, ref, atol=1e-4, rtol=1e-4), float(
        jnp.max(jnp.abs(out2 - ref)))

    print("KERNEL_OK")
</pallas_src>

<mosaic_0001>
module attributes {stable_mosaic.version = 11 : i64} {
  func.func @_fused_bn_relu_kernel(%arg0: i32, %arg1: memref<3xf32, #tpu.memory_space<smem>>, %arg2: memref<3xf32, #tpu.memory_space<smem>>, %arg3: memref<2x1x2x128xf32, #tpu.memory_space<vmem>>, %arg4: memref<2x1x2x128xf32, #tpu.memory_space<vmem>>) attributes {dimension_semantics = [#tpu.dimension_semantics<parallel>], iteration_bounds = array<i64: 3>, scalar_prefetch = 0 : i64, scratch_operands = 0 : i64, tpu.core_type = #tpu.core_type<tc>, window_params = [{transform_indices = @transform_0, window_bounds = array<i64: 3>}, {transform_indices = @transform_1, window_bounds = array<i64: 3>}, {transform_indices = @transform_2, window_bounds = array<i64: 2, 1, 2, 128>}, {transform_indices = @transform_3, window_bounds = array<i64: 2, 1, 2, 128>}]} {
    %c0 = arith.constant 0 : index
    %c0_0 = arith.constant 0 : index
    %c0_1 = arith.constant 0 : index
    %c0_2 = arith.constant 0 : index
    %0 = vector.load %arg3[%c0, %c0_0, %c0_1, %c0_2] : memref<2x1x2x128xf32, #tpu.memory_space<vmem>>, vector<2x1x2x128xf32>
    %1 = vector.shape_cast %0 : vector<2x1x2x128xf32> to vector<2x2x128xf32>
    %2 = vector.shape_cast %1 : vector<2x2x128xf32> to vector<1x2x2x128xf32>
    %cst = arith.constant dense<0.000000e+00> : vector<1xf32>
    %3 = vector.multi_reduction <add>, %2, %cst [1, 2, 3] : vector<1x2x2x128xf32> to vector<1xf32>
    %4 = vector.shape_cast %3 : vector<1xf32> to vector<1x1x1x1xf32>
    %5 = vector.extract %4[0, 0, 0, 0] : f32 from vector<1x1x1x1xf32>
    %cst_3 = arith.constant 0.001953125 : f32
    %6 = arith.mulf %5, %cst_3 : f32
    %7 = vector.broadcast %6 : f32 to vector<2x2x128xf32>
    %8 = arith.subf %1, %7 : vector<2x2x128xf32>
    %9 = arith.mulf %8, %8 : vector<2x2x128xf32>
    %10 = vector.shape_cast %9 : vector<2x2x128xf32> to vector<1x2x2x128xf32>
    %cst_4 = arith.constant dense<0.000000e+00> : vector<1xf32>
    %11 = vector.multi_reduction <add>, %10, %cst_4 [1, 2, 3] : vector<1x2x2x128xf32> to vector<1xf32>
    %12 = vector.shape_cast %11 : vector<1xf32> to vector<1x1x1x1xf32>
    %13 = vector.extract %12[0, 0, 0, 0] : f32 from vector<1x1x1x1xf32>
    %cst_5 = arith.constant 0.000000e+00 : f32
    %14 = arith.mulf %cst_5, %6 : f32
    %15 = arith.mulf %14, %6 : f32
    %16 = arith.subf %13, %15 : f32
    %cst_6 = arith.constant 0.000000e+00 : f32
    %17 = arith.maximumf %16, %cst_6 : f32
    %cst_7 = arith.constant 0.001953125 : f32
    %18 = arith.mulf %17, %cst_7 : f32
    %cst_8 = arith.constant 9.99999974E-6 : f32
    %19 = arith.addf %18, %cst_8 : f32
    %20 = math.rsqrt %19 : f32
    %21 = arith.index_cast %arg0 : i32 to index
    %22 = memref.load %arg1[%21] : memref<3xf32, #tpu.memory_space<smem>>
    %23 = arith.mulf %22, %20 : f32
    %24 = vector.broadcast %23 : f32 to vector<2x2x128xf32>
    %25 = arith.mulf %8, %24 : vector<2x2x128xf32>
    %26 = arith.index_cast %arg0 : i32 to index
    %27 = memref.load %arg2[%26] : memref<3xf32, #tpu.memory_space<smem>>
    %28 = vector.broadcast %27 : f32 to vector<2x2x128xf32>
    %29 = arith.addf %25, %28 : vector<2x2x128xf32>
    %cst_9 = arith.constant 0.000000e+00 : f32
    %30 = vector.broadcast %cst_9 : f32 to vector<2x2x128xf32>
    %31 = arith.maximumf %29, %30 : vector<2x2x128xf32>
    %c0_10 = arith.constant 0 : index
    %c0_11 = arith.constant 0 : index
    %c0_12 = arith.constant 0 : index
    %c0_13 = arith.constant 0 : index
    %32 = vector.load %arg4[%c0_10, %c0_11, %c0_12, %c0_13] : memref<2x1x2x128xf32, #tpu.memory_space<vmem>>, vector<2x1x2x128xf32>
    %33 = vector.shape_cast %32 : vector<2x1x2x128xf32> to vector<2x2x128xf32>
    %34 = vector.shape_cast %31 : vector<2x2x128xf32> to vector<2x1x2x128xf32>
    tpu.vector_store %arg4[%c0_10, %c0_11, %c0_12, %c0_13], %34 {strides = array<i32>} : memref<2x1x2x128xf32, #tpu.memory_space<vmem>>, vector<2x1x2x128xf32>,
    return
  }
  func.func @transform_0(%arg0: i32) -> i32 {
    %c0_i32 = arith.constant 0 : i32
    %c0_i32_0 = arith.constant 0 : i32
    return %c0_i32 : i32
  }
  func.func @transform_1(%arg0: i32) -> i32 {
    %c0_i32 = arith.constant 0 : i32
    %c0_i32_0 = arith.constant 0 : i32
    return %c0_i32 : i32
  }
  func.func @transform_2(%arg0: i32) -> (i32, i32, i32, i32) {
    %c0_i32 = arith.constant 0 : i32
    %c0_i32_0 = arith.constant 0 : i32
    %c0_i32_1 = arith.constant 0 : i32
    %c0_i32_2 = arith.constant 0 : i32
    return %c0_i32, %arg0, %c0_i32_0, %c0_i32_1 : i32, i32, i32, i32
  }
  func.func @transform_3(%arg0: i32) -> (i32, i32, i32, i32) {
    %c0_i32 = arith.constant 0 : i32
    %c0_i32_0 = arith.constant 0 : i32
    %c0_i32_1 = arith.constant 0 : i32
    %c0_i32_2 = arith.constant 0 : i32
    return %c0_i32, %arg0, %c0_i32_0, %c0_i32_1 : i32, i32, i32, i32
  }
}

</mosaic_0001>

<llo_original>
// kernel: batchnorm2d_relu.1
$region0: #{batchnorm2d_relu.1}
  #allocation0 [shape = 'u32[]', space=smem, size = 0x4, offset = 0x4, fixed_abs, tag = 'smem constant byte address 0x4 - core index']
  #allocation1 [shape = 'u32[144,128]{1,0:T(1,128)}', space=vmem, size = 0x12000, scoped, tag = 'internal scratch']
  %s0 = inlined_call_operand.vmem [shape: f32[3], index: 0, kind: input, shape index: {}]
  %s1 = inlined_call_operand.vmem [shape: f32[3], index: 1, kind: input, shape index: {}]
  %s2 = inlined_call_operand.vmem [shape: f32[2,3,2,128], index: 2, kind: input, shape index: {}]
  %s3 = inlined_call_operand.vmem [shape: f32[2,3,2,128], index: 3, kind: output, shape index: {}]
  %s4 = sld [smem:[#allocation0]]
  $region117: #{batchnorm2d_relu.1} parent=0
    _
  %s6 = ssub.s32 1, %s4
  %s7 = scalar_select 0, %s6, %s4
  $region1: #{batchnorm2d_relu.1} parent=0
    #allocation2 [shape = 'u8[512]{0}', space=smem, size = 0x200, scoped, tag = 'input window, operand 0, single buffered']
    #allocation3 [shape = 's32[2]{0}', space=sflag, size = 0x8, scoped, tag = 'scoped memory for batchnorm2d_relu.1']
    #allocation4 [shape = 'u8[512]{0}', space=smem, size = 0x200, scoped, tag = 'input window, operand 1, single buffered']
    #allocation5 [shape = 's32[1]{0}', space=sflag, size = 0x4, scoped, tag = 'scoped memory for batchnorm2d_relu.1']
    #allocation6 [shape = 'u8[4096]{0}', space=vmem, size = 0x1000, scoped, tag = 'input window, operand 2']
    #allocation7 [shape = 'u8[4096]{0}', space=vmem, size = 0x1000, scoped, tag = 'output window, operand 0']
    %8 = vsyncpa [#allocation3], 0
    %9 = vsyncpa [#allocation5], 0
    loop: start=0, step=1, limit=5
    $region2: #{batchnorm2d_relu.1} parent=1 // loop_pre_header
      _
    $region3: #{batchnorm2d_relu.1} parent=1 // loop_header
      %s11 = sphi 0, %s15
      %p12 = scmp.ge.s32.totalorder %s11, 5
      %s19 = sphi 0, %s19
      %s21 = sphi 0, %s19
      %s22 = sphi 0, %s21
      %s36 = sphi 0, %s22
      %s40 = sphi 0, %s40
      %s42 = sphi 0, %s40
      %s43 = sphi 0, %s42
      %s57 = sphi 0, %s43
      %s63 = sphi 0, %s65
      %s66 = sphi 0, %s63
      %s67 = sphi 0, %s66
      %s83 = sphi 0, %s67
      %s89 = sphi 0, %s91
      %s92 = sphi 0, %s89
      %s93 = sphi 0, %s92
      %s109 = sphi 0, %s93
    $region4: #{batchnorm2d_relu.1} parent=1 // loop_header_branch
      %14 = sbr.rel (%p12) target = $region8
    $region5: #{batchnorm2d_relu.1} parent=1 // loop_body
      %s16 = ssub.s32 %s11, 1
      %s17 = ssub.s32 %s11, 2
      %s18 = sadd.s32 %s11, 1
      %s20 = sadd.s32 %s19, 1
      %p23 = scmp.eq.s32.totalorder %s11, 2
      %p24 = scmp.ne.s32.totalorder %s19, %s21
      %p25 = scmp.eq.s32.totalorder %s11, 0
      %p26 = por %p24, %p25
      %p27 = scmp.ne.s32.totalorder %s19, %s21
      %p28 = scmp.eq.s32.totalorder %s16, 2
      %p29 = por %p27, %p28
      %p30 = scmp.ne.s32.totalorder %s21, %s22
      %p31 = scmp.eq.s32.totalorder %s16, 0
      %p32 = por %p30, %p31
      %p33 = scmp.ne.s32.totalorder %s21, %s22
      %p34 = scmp.eq.s32.totalorder %s17, 2
      %p35 = por %p33, %p34
      %p37 = scmp.ne.s32.totalorder %s22, %s36
      %p38 = scmp.eq.s32.totalorder %s17, 0
      %p39 = por %p37, %p38
      %s41 = sadd.s32 %s40, 1
      %p44 = scmp.eq.s32.totalorder %s11, 2
      %p45 = scmp.ne.s32.totalorder %s40, %s42
      %p46 = scmp.eq.s32.totalorder %s11, 0
      %p47 = por %p45, %p46
      %p48 = scmp.ne.s32.totalorder %s40, %s42
      %p49 = scmp.eq.s32.totalorder %s16, 2
      %p50 = por %p48, %p49
      %p51 = scmp.ne.s32.totalorder %s42, %s43
      %p52 = scmp.eq.s32.totalorder %s16, 0
      %p53 = por %p51, %p52
      %p54 = scmp.ne.s32.totalorder %s42, %s43
      %p55 = scmp.eq.s32.totalorder %s17, 2
      %p56 = por %p54, %p55
      %p58 = scmp.ne.s32.totalorder %s43, %s57
      %p59 = scmp.eq.s32.totalorder %s17, 0
      %p60 = por %p58, %p59
      %s61 = ssub.s32 %s11, %s18
      %p62 = scmp.eq.s32.totalorder %s61, 0
      %s64 = sadd.s32 %s63, 1
      %s65 = scalar_select %p62, %s63, %s64
      %p68 = pneg %p62
      %p69 = scmp.eq.s32.totalorder %s11, 2
      %p70 = por %p68, %p69
      %p71 = scmp.ne.s32.totalorder %s63, %s66
      %p72 = scmp.eq.s32.totalorder %s11, 0
      %p73 = por %p71, %p72
      %p74 = scmp.ne.s32.totalorder %s63, %s66
      %p75 = scmp.eq.s32.totalorder %s16, 2
      %p76 = por %p74, %p75
      %p77 = scmp.ne.s32.totalorder %s66, %s67
      %p78 = scmp.eq.s32.totalorder %s16, 0
      %p79 = por %p77, %p78
      %p80 = scmp.ne.s32.totalorder %s66, %s67
      %p81 = scmp.eq.s32.totalorder %s17, 2
      %p82 = por %p80, %p81
      %p84 = scmp.ne.s32.totalorder %s67, %s83
      %p85 = scmp.eq.s32.totalorder %s17, 0
      %p86 = por %p84, %p85
      %s87 = ssub.s32 %s11, %s18
      %p88 = scmp.eq.s32.totalorder %s87, 0
      %s90 = sadd.s32 %s89, 1
      %s91 = scalar_select %p88, %s89, %s90
      %p94 = pneg %p88
      %p95 = scmp.eq.s32.totalorder %s11, 2
      %p96 = por %p94, %p95
      %p97 = scmp.ne.s32.totalorder %s89, %s92
      %p98 = scmp.eq.s32.totalorder %s11, 0
      %p99 = por %p97, %p98
      %p100 = scmp.ne.s32.totalorder %s89, %s92
      %p101 = scmp.eq.s32.totalorder %s16, 2
      %p102 = por %p100, %p101
      %p103 = scmp.ne.s32.totalorder %s92, %s93
      %p104 = scmp.eq.s32.totalorder %s16, 0
      %p105 = por %p103, %p104
      %p106 = scmp.ne.s32.totalorder %s92, %s93
      %p107 = scmp.eq.s32.totalorder %s17, 2
      %p108 = por %p106, %p107
      %p110 = scmp.ne.s32.totalorder %s93, %s109
      %p111 = scmp.eq.s32.totalorder %s17, 0
      %p112 = por %p110, %p111
      %p113 = scmp.le.s32.totalorder 1, %s11
      %p114 = scmp.lt.s32.totalorder %s11, 4
      %p115 = pnand %p113, %p114
      %p116 = pneg %p115
      // Predicated region
      $region9: #{batchnorm2d_relu.1} parent=5 // pred_check
        _
      $region10: #{batchnorm2d_relu.1} parent=5 // pred_check_branch
        %118 = sbr.rel (%p115) target = $region12
      $region11: #{batchnorm2d_relu.1} parent=5 // pred_region
        %s119 = ssub.s32 %s11, 1
        // Predicated region
        $region13: #{batchnorm2d_relu.1} parent=11 // pred_check
          %p120 = pneg %p32
        $region14: #{batchnorm2d_relu.1} parent=11 // pred_check_branch
          %122 = sbr.rel (%p120) target = $region16
        $region15: #{batchnorm2d_relu.1} parent=11 // pred_region
          %s124 = ssub.s32 16, 16
          %125 = vsyncadd [#allocation3], %s124
          %s127 = sshll.u32 %s0, 4
          %s128 = int_to_ptr.vmem [resolvable:$true] %s127
          %130 = dma.vmem_to_smem %s128, 16, [#allocation2], [#allocation3]
        $region16: #{batchnorm2d_relu.1} parent=11 // pred_fallthru
          _
        // Predicated region
        $region17: #{batchnorm2d_relu.1} parent=11 // pred_check
          %p131 = pneg %p53
        $region18: #{batchnorm2d_relu.1} parent=11 // pred_check_branch
          %133 = sbr.rel (%p131) target = $region20
        $region19: #{batchnorm2d_relu.1} parent=11 // pred_region
          %s135 = ssub.s32 16, 16
          %136 = vsyncadd [#allocation5], %s135
          %s138 = sshll.u32 %s1, 4
          %s139 = int_to_ptr.vmem [resolvable:$true] %s138
          %141 = dma.vmem_to_smem %s139, 16, [#allocation4], [#allocation5]
        $region20: #{batchnorm2d_relu.1} parent=11 // pred_fallthru
          _
      $region12: #{batchnorm2d_relu.1} parent=5 // pred_fallthru
        _
      %p142 = scmp.lt.s32.totalorder %s11, 3
      // Predicated region
      $region21: #{batchnorm2d_relu.1} parent=5 // pred_check
        %p143 = pneg %p142
      $region22: #{batchnorm2d_relu.1} parent=5 // pred_check_branch
        %145 = sbr.rel (%p143) target = $region24
      $region23: #{batchnorm2d_relu.1} parent=5 // pred_region
        // Predicated region
        $region25: #{batchnorm2d_relu.1} parent=23 // pred_check
          %p146 = pneg %p73
        $region26: #{batchnorm2d_relu.1} parent=23 // pred_check_branch
          %148 = sbr.rel (%p146) target = $region28
        $region27: #{batchnorm2d_relu.1} parent=23 // pred_region
          %s149 = sand.u32 %s63, 1
          %s150 = sand.u32 %s63, 1
          %s151 = smul.addr %s150, 4
          %s152 = scalar_lea.vmem [#allocation6], %s151
          %s153 = smul.addr %s11, 2
          %s154 = scalar_lea.vmem %s2, %s153
          // Predicated region
          $region29: #{batchnorm2d_relu.1} parent=27 // pred_check
            _
          $region30: #{batchnorm2d_relu.1} parent=27 // pred_check_branch
            %156 = sbr.rel (0) target = $region32
          $region31: #{batchnorm2d_relu.1} parent=27 // pred_region
            // Predicated region
            $region33: #{batchnorm2d_relu.1} parent=31 // pred_check
              _
            $region34: #{batchnorm2d_relu.1} parent=31 // pred_check_branch
              %158 = sbr.rel target = $region36
            $region35: #{batchnorm2d_relu.1} parent=31 // pred_region
              // Predicated region
              $region48: #{batchnorm2d_relu.1} parent=35 // pred_check
                _
              $region49: #{batchnorm2d_relu.1} parent=35 // pred_check_branch
                %175 = sbr.rel (0) target = $region51
              $region50: #{batchnorm2d_relu.1} parent=35 // pred_region
                loop: start=0, step=1, limit=1
                $region52: #{batchnorm2d_relu.1} parent=50 // loop_pre_header
                  _
                $region53: #{batchnorm2d_relu.1} parent=50 // loop_header
                  %s178 = sphi 0, %s182
                  %p179 = scmp.ge.s32.totalorder %s178, 1
                  %s183 = sphi %s154, %s154
                  %s184 = sphi %s152, %s152
                $region54: #{batchnorm2d_relu.1} parent=50 // loop_header_branch
                  %181 = sbr.rel (%p179) target = $region58
                $region55: #{batchnorm2d_relu.1} parent=50 // loop_body
                  %v185 = vld [vmem:[%s183] sm:$0x3]
                  %186 = vst [vmem:[%s184] sm:$0x3] %v185
                  %v187 = vld [vmem:[%s183 + $0x6] sm:$0x3]
                  %188 = vst [vmem:[%s184 + $0x2] sm:$0x3] %v187
                $region56: #{batchnorm2d_relu.1} parent=50 // loop_footer
                  %s182 = sadd.s32 1, %s178
                $region57: #{batchnorm2d_relu.1} parent=50 // loop_footer_branch
                  %177 = sbr.rel target = $region53
                $region58: #{batchnorm2d_relu.1} parent=50 // loop_exit
                  _
              $region51: #{batchnorm2d_relu.1} parent=35 // pred_fallthru
                _
            $region36: #{batchnorm2d_relu.1} parent=31 // pred_fallthru
              _
            // Predicated region
            $region37: #{batchnorm2d_relu.1} parent=31 // pred_check
              _
            $region38: #{batchnorm2d_relu.1} parent=31 // pred_check_branch
              %160 = sbr.rel (0) target = $region40
            $region39: #{batchnorm2d_relu.1} parent=31 // pred_region
              loop: start=0, step=1, limit=1
              $region41: #{batchnorm2d_relu.1} parent=39 // loop_pre_header
                _
              $region42: #{batchnorm2d_relu.1} parent=39 // loop_header
                %s163 = sphi 0, %s167
                %p164 = scmp.ge.s32.totalorder %s163, 1
                %s168 = sphi %s154, %s154
                %s169 = sphi %s152, %s152
              $region43: #{batchnorm2d_relu.1} parent=39 // loop_header_branch
                %166 = sbr.rel (%p164) target = $region47
              $region44: #{batchnorm2d_relu.1} parent=39 // loop_body
                %v170 = vld [vmem:[%s168] sm:$0x3]
                %171 = vst [vmem:[%s169] sm:$0x3] %v170
                %v172 = vld [vmem:[%s168 + $0x6] sm:$0x3]
                %173 = vst [vmem:[%s169 + $0x2] sm:$0x3] %v172
              $region45: #{batchnorm2d_relu.1} parent=39 // loop_footer
                %s167 = sadd.s32 1, %s163
              $region46: #{batchnorm2d_relu.1} parent=39 // loop_footer_branch
                %162 = sbr.rel target = $region42
              $region47: #{batchnorm2d_relu.1} parent=39 // loop_exit
                _
            $region40: #{batchnorm2d_relu.1} parent=31 // pred_fallthru
              _
          $region32: #{batchnorm2d_relu.1} parent=27 // pred_fallthru
            _
          %189 = vnop
        $region28: #{batchnorm2d_relu.1} parent=23 // pred_fallthru
          _
      $region24: #{batchnorm2d_relu.1} parent=5 // pred_fallthru
        _
      %p190 = scmp.le.s32.totalorder 1, %s11
      %p191 = scmp.lt.s32.totalorder %s11, 4
      %p192 = pnand %p190, %p191
      %p193 = pneg %p192
      // Predicated region
      $region59: #{batchnorm2d_relu.1} parent=5 // pred_check
        _
      $region60: #{batchnorm2d_relu.1} parent=5 // pred_check_branch
        %195 = sbr.rel (%p192) target = $region62
      $region61: #{batchnorm2d_relu.1} parent=5 // pred_region
        %s196 = ssub.s32 %s11, 1
        // Predicated region
        $region63: #{batchnorm2d_relu.1} parent=61 // pred_check
          %p197 = pneg %p32
        $region64: #{batchnorm2d_relu.1} parent=61 // pred_check_branch
          %199 = sbr.rel (%p197) target = $region66
        $region65: #{batchnorm2d_relu.1} parent=61 // pred_region
          %200 = dma.done [#allocation3], 16
        $region66: #{batchnorm2d_relu.1} parent=61 // pred_fallthru
          _
        // Predicated region
        $region67: #{batchnorm2d_relu.1} parent=61 // pred_check
          %p201 = pneg %p53
        $region68: #{batchnorm2d_relu.1} parent=61 // pred_check_branch
          %203 = sbr.rel (%p201) target = $region70
        $region69: #{batchnorm2d_relu.1} parent=61 // pred_region
          %204 = dma.done [#allocation5], 16
        $region70: #{batchnorm2d_relu.1} parent=61 // pred_fallthru
          _
        %s205 = sand.u32 %s66, 1
        %s206 = sand.u32 %s66, 1
        %s207 = smul.addr %s206, 4
        %s208 = scalar_lea.vmem [#allocation6], %s207
        // Predicated region
        $region71: #{batchnorm2d_relu.1} parent=61 // pred_check
          %p209 = pneg %p79
        $region72: #{batchnorm2d_relu.1} parent=61 // pred_check_branch
          %211 = sbr.rel (%p209) target = $region74
        $region73: #{batchnorm2d_relu.1} parent=61 // pred_region
          _
        $region74: #{batchnorm2d_relu.1} parent=61 // pred_fallthru
          _
        %212 = sfence
        %p213 = pneg %p32
        %p214 = pneg %p29
        %p215 = pneg %p53
        %p216 = pneg %p50
        %s217 = sand.u32 %s66, 1
        %s218 = sand.u32 %s66, 1
        %s219 = smul.addr %s218, 4
        %s220 = scalar_lea.vmem [#allocation6], %s219
        %p221 = pneg %p79
        %p222 = pneg %p76
        %p223 = pneg %p105
        %p224 = pneg %p102
        %s225 = sand.u32 %s92, 1
        %s226 = sand.u32 %s92, 1
        %s227 = smul.addr %s226, 4
        %s228 = scalar_lea.vmem [#allocation7], %s227
        %v229 = vld [vmem:[%s208] sm:$0x3]
        %v230 = vld [vmem:[%s208 + $0x2] sm:$0x3]
        %vm231 = vcmask 1041408
        %v232 = vsel %vm231, %v229, 0.0
        %v233 = vsel %vm231, %v230, 0.0
        %v234 = vadd.f32 %v232, %v233
        %235 = vadd.xlane.f32.xlu0 %v234
        %v236 = vpop.xlane.xlu0 %235
        %v237 = vrot.slane %v236, 4
        %v238 = vadd.f32 %v236, %v237
        %v239 = vrot.slane %v238, 2
        %v240 = vadd.f32 %v238, %v239
        %v241 = vrot.slane %v240, 1
        %v242 = vadd.f32 %v240, %v241
        %s243 = vtos %v242
        %s244 = smul.f32 %s243, 0.001953125
        %v245 = vstv %s244
        %v246 = vsub.f32 %v229, %v245
        %v247 = vsub.f32 %v230, %v245
        %v248 = vmul.f32 %v246, %v246
        %v249 = vmul.f32 %v247, %v247
        %v250 = vsel %vm231, %v248, 0.0
        %v251 = vsel %vm231, %v249, 0.0
        %v252 = vadd.f32 %v250, %v251
        %253 = vadd.xlane.f32.xlu0 %v252
        %v254 = vpop.xlane.xlu0 %253
        %v255 = vrot.slane %v254, 4
        %v256 = vadd.f32 %v254, %v255
        %v257 = vrot.slane %v256, 2
        %v258 = vadd.f32 %v256, %v257
        %v259 = vrot.slane %v258, 1
        %v260 = vadd.f32 %v258, %v259
        %s261 = vtos %v260
        %s262 = smul.f32 %s244, 0.0
        %s263 = smul.f32 %s262, %s244
        %s264 = ssub.f32 %s261, %s263
        %s265 = smax.f32 %s264, 0.0
        %s266 = smul.f32 %s265, 0.001953125
        %s267 = sadd.f32 %s266, 1e-05
        %v268 = vstv %s267
        %v269 = vrsqrt.pop %v268
        %s270 = vtos %v269
        %s271 = sld [smem:[#allocation2 + %s16]]
        %s272 = smul.f32 %s271, %s270
        %v273 = vstv %s272
        %v274 = vmul.f32 %v246, %v273
        %v275 = vmul.f32 %v247, %v273
        %s276 = sld [smem:[#allocation4 + %s16]]
        %v277 = vstv %s276
        %v278 = vadd.f32 %v274, %v277
        %v279 = vadd.f32 %v275, %v277
        %v280 = vmax.f32 %v278, 0.0
        %v281 = vmax.f32 %v279, 0.0
        %282 = vst [vmem:[%s228] sm:$0x3] %v280
        %283 = vst [vmem:[%s228 + $0x2] sm:$0x3] %v281
        %s284 = sand.u32 %s92, 1
        %s285 = sand.u32 %s92, 1
        %s286 = smul.addr %s285, 4
        %s287 = scalar_lea.vmem [#allocation7], %s286
        // Predicated region
        $region75: #{batchnorm2d_relu.1} parent=61 // pred_check
          %p288 = pneg %p102
        $region76: #{batchnorm2d_relu.1} parent=61 // pred_check_branch
          %290 = sbr.rel (%p288) target = $region78
        $region77: #{batchnorm2d_relu.1} parent=61 // pred_region
          %s291 = smul.addr %s16, 2
          %s292 = scalar_lea.vmem %s3, %s291
          // Predicated region
          $region79: #{batchnorm2d_relu.1} parent=77 // pred_check
            _
          $region80: #{batchnorm2d_relu.1} parent=77 // pred_check_branch
            %294 = sbr.rel (0) target = $region82
          $region81: #{batchnorm2d_relu.1} parent=77 // pred_region
            // Predicated region
            $region83: #{batchnorm2d_relu.1} parent=81 // pred_check
              _
            $region84: #{batchnorm2d_relu.1} parent=81 // pred_check_branch
              %296 = sbr.rel target = $region86
            $region85: #{batchnorm2d_relu.1} parent=81 // pred_region
              // Predicated region
              $region98: #{batchnorm2d_relu.1} parent=85 // pred_check
                _
              $region99: #{batchnorm2d_relu.1} parent=85 // pred_check_branch
                %313 = sbr.rel (0) target = $region101
              $region100: #{batchnorm2d_relu.1} parent=85 // pred_region
                loop: start=0, step=1, limit=1
                $region102: #{batchnorm2d_relu.1} parent=100 // loop_pre_header
                  _
                $region103: #{batchnorm2d_relu.1} parent=100 // loop_header
                  %s316 = sphi 0, %s320
                  %p317 = scmp.ge.s32.totalorder %s316, 1
                  %s321 = sphi %s287, %s287
                  %s322 = sphi %s292, %s292
                $region104: #{batchnorm2d_relu.1} parent=100 // loop_header_branch
                  %319 = sbr.rel (%p317) target = $region108
                $region105: #{batchnorm2d_relu.1} parent=100 // loop_body
                  %v323 = vld [vmem:[%s321] sm:$0x3]
                  %324 = vst [vmem:[%s322] sm:$0x3] %v323
                  %v325 = vld [vmem:[%s321 + $0x2] sm:$0x3]
                  %326 = vst [vmem:[%s322 + $0x6] sm:$0x3] %v325
                $region106: #{batchnorm2d_relu.1} parent=100 // loop_footer
                  %s320 = sadd.s32 1, %s316
                $region107: #{batchnorm2d_relu.1} parent=100 // loop_footer_branch
                  %315 = sbr.rel target = $region103
                $region108: #{batchnorm2d_relu.1} parent=100 // loop_exit
                  _
              $region101: #{batchnorm2d_relu.1} parent=85 // pred_fallthru
                _
            $region86: #{batchnorm2d_relu.1} parent=81 // pred_fallthru
              _
            // Predicated region
            $region87: #{batchnorm2d_relu.1} parent=81 // pred_check
              _
            $region88: #{batchnorm2d_relu.1} parent=81 // pred_check_branch
              %298 = sbr.rel (0) target = $region90
            $region89: #{batchnorm2d_relu.1} parent=81 // pred_region
              loop: start=0, step=1, limit=1
              $region91: #{batchnorm2d_relu.1} parent=89 // loop_pre_header
                _
              $region92: #{batchnorm2d_relu.1} parent=89 // loop_header
                %s301 = sphi 0, %s305
                %p302 = scmp.ge.s32.totalorder %s301, 1
                %s306 = sphi %s287, %s287
                %s307 = sphi %s292, %s292
              $region93: #{batchnorm2d_relu.1} parent=89 // loop_header_branch
                %304 = sbr.rel (%p302) target = $region97
              $region94: #{batchnorm2d_relu.1} parent=89 // loop_body
                %v308 = vld [vmem:[%s306] sm:$0x3]
                %309 = vst [vmem:[%s307] sm:$0x3] %v308
                %v310 = vld [vmem:[%s306 + $0x2] sm:$0x3]
                %311 = vst [vmem:[%s307 + $0x6] sm:$0x3] %v310
              $region95: #{batchnorm2d_relu.1} parent=89 // loop_footer
                %s305 = sadd.s32 1, %s301
              $region96: #{batchnorm2d_relu.1} parent=89 // loop_footer_branch
                %300 = sbr.rel target = $region92
              $region97: #{batchnorm2d_relu.1} parent=89 // loop_exit
                _
            $region90: #{batchnorm2d_relu.1} parent=81 // pred_fallthru
              _
          $region82: #{batchnorm2d_relu.1} parent=77 // pred_fallthru
            _
          %327 = vnop
        $region78: #{batchnorm2d_relu.1} parent=61 // pred_fallthru
          _
      $region62: #{batchnorm2d_relu.1} parent=5 // pred_fallthru
        _
      %p328 = scmp.le.s32.totalorder 2, %s11
      // Predicated region
      $region109: #{batchnorm2d_relu.1} parent=5 // pred_check
        %p329 = pneg %p328
      $region110: #{batchnorm2d_relu.1} parent=5 // pred_check_branch
        %331 = sbr.rel (%p329) target = $region112
      $region111: #{batchnorm2d_relu.1} parent=5 // pred_region
        %s332 = ssub.s32 %s11, 2
        // Predicated region
        $region113: #{batchnorm2d_relu.1} parent=111 // pred_check
          %p333 = pneg %p108
        $region114: #{batchnorm2d_relu.1} parent=111 // pred_check_branch
          %335 = sbr.rel (%p333) target = $region116
        $region115: #{batchnorm2d_relu.1} parent=111 // pred_region
          %s336 = sand.u32 %s93, 1
          %s337 = sand.u32 %s93, 1
          %s338 = smul.addr %s337, 4
          %s339 = scalar_lea.vmem [#allocation7], %s338
        $region116: #{batchnorm2d_relu.1} parent=111 // pred_fallthru
          _
      $region112: #{batchnorm2d_relu.1} parent=5 // pred_fallthru
        _
    $region6: #{batchnorm2d_relu.1} parent=1 // loop_footer
      %s15 = sadd.s32 1, %s11
    $region7: #{batchnorm2d_relu.1} parent=1 // loop_footer_branch
      %10 = sbr.rel target = $region3
    $region8: #{batchnorm2d_relu.1} parent=1 // loop_exit
      _
    %340 = vsyncpa [#allocation3], 1
    %s341 = scalar_lea.sflag [#allocation3], 1
    %342 = vsyncpa %s341, 1
    %343 = vsyncpa [#allocation5], 1

</llo_original>
